<compile_context>
chip_gen: v5e
topology: v5e:2x2
jax: 0.10.0
libtpu: 0.0.40
codegen_flags: <defaults>
</compile_context>

<pallas_src>
import functools

import jax
import jax.numpy as jnp
from jax.experimental import pallas as pl
from jax.experimental.pallas import tpu as pltpu


def _round_up(n, m):
    return ((n + m - 1) // m) * m


def neuronet1_kernel(x_ref, w1t_ref, b1_ref, w2_ref, b2_ref, o_ref):
    """One batch tile. Shapes inside the kernel:
       x_ref   : (TB, In)  streamed batch tile (f32 or bf16), batch on sublanes
       w1t_ref : (In, Hp)  transposed layer-1 weight, resident in VMEM
       b1_ref  : (1, Hp)   f32
       w2_ref  : (1, Hp)   f32 (layer-2 weight as a row)
       b2_ref  : (1,)      f32 scalar in SMEM
       o_ref   : (TB, 1)   f32 output column
    """
    # Layer 1 on the MXU: (TB, In) @ (In, Hp) -> (TB, Hp), f32 accumulation.
    h = jnp.dot(x_ref[...], w1t_ref[...], preferred_element_type=jnp.float32)
    h = jnp.maximum(h + b1_ref[...], 0.0)                 # bias + ReLU (VPU)

    # Layer 2: scale by w2 on the VPU, reduce across lanes on the XLU.
    z = jnp.sum(h * w2_ref[...], axis=-1, keepdims=True) + b2_ref[0]   # (TB, 1)

    # Numerically stable sigmoid (exp on the EUP).
    ez = jnp.exp(-jnp.abs(z))
    r = 1.0 / (1.0 + ez)
    sig = jnp.where(z >= 0, r, ez * r)

    o_ref[...] = sig.astype(o_ref.dtype)


def neuronet1_forward(x, w1, b1, w2, b2, *, block_batch=8192, stream_dtype=None):
    """Forward pass of NeuroNet1.

    x: (B, In); w1: (H, In); b1: (H,); w2: (1, H); b2: (1,)  (PyTorch layouts).
    Returns (B, 1), matching nn.Module.forward.

    block_batch : rows of x per grid step (8192 is a good default on v5e/v6e;
                  16-32K on v7x, keeping >= 2 tiles so both TCs get work).
    stream_dtype: optional narrower dtype (e.g. jnp.bfloat16) for streaming
                  x / w1; all post-matmul math stays f32.
    """
    B, In = x.shape
    H = w1.shape[0]
    out_dtype = x.dtype
    sdt = jnp.dtype(stream_dtype) if stream_dtype is not None else jnp.dtype(x.dtype)

    Hp = _round_up(H, 8)                       # sublane/lane pad only to 8 (f32 tile)
    TB = max(8, _round_up(min(block_batch, B), 8))
    Bp = _round_up(B, TB)
    G = Bp // TB

    # Natural-layout x: no transpose.  Pad only if the batch is ragged w.r.t. TB.
    x_s = x.astype(sdt)
    if Bp != B:
        xp = jnp.zeros((Bp, In), sdt).at[:B, :].set(x_s)
    else:
        xp = x_s

    # Tiny resident parameters (padded hidden rows/cols are zero -> ReLU(0)*0 = 0).
    w1t = jnp.zeros((In, Hp), sdt).at[:, :H].set(w1.T.astype(sdt))
    b1p = jnp.zeros((1, Hp), jnp.float32).at[0, :H].set(b1.astype(jnp.float32))
    w2p = jnp.zeros((1, Hp), jnp.float32).at[0, :H].set(
        w2.reshape(-1).astype(jnp.float32))
    b2p = jnp.asarray(b2, jnp.float32).reshape(1)

    # Raise the scoped VMEM limit only when huge tiles (e.g. 32K rows on v7x)
    # would overflow the default; cap below v7x's 64 MiB physical VMEM.
    itemsize = sdt.itemsize
    vmem_est = (2 * TB * In * itemsize          # double-buffered x tiles
                + 2 * TB * 4                    # double-buffered output tiles
                + In * Hp * itemsize + 2 * Hp * 4 + 8   # resident weights
                + 4 * TB * Hp * 4)              # h intermediate + headroom
    compiler_kwargs = dict(dimension_semantics=("parallel",))
    if vmem_est > (24 << 20):
        compiler_kwargs["vmem_limit_bytes"] = int(
            min(max(2 * vmem_est, 32 << 20), 64 << 20))

    out = pl.pallas_call(
        neuronet1_kernel,
        out_shape=jax.ShapeDtypeStruct((Bp, 1), jnp.float32),
        grid=(G,),
        in_specs=[
            pl.BlockSpec((TB, In), lambda i: (i, 0)),     # streamed batch tile
            pl.BlockSpec((In, Hp), lambda i: (0, 0)),     # resident weights
            pl.BlockSpec((1, Hp), lambda i: (0, 0)),
            pl.BlockSpec((1, Hp), lambda i: (0, 0)),
            pl.BlockSpec(memory_space=pltpu.MemorySpace.SMEM),   # b2 scalar
        ],
        out_specs=pl.BlockSpec((TB, 1), lambda i: (i, 0)),
        compiler_params=pltpu.CompilerParams(**compiler_kwargs),
    )(xp, w1t, b1p, w2p, b2p)

    return out[:B, :].astype(out_dtype)


if __name__ == "__main__":
    # Small shapes consistent with the module; batch=300 with block_batch=128
    # exercises a multi-tile grid (G=3) plus the ragged-batch padding path.
    batch, input_size, hidden_size = 300, 32, 32

    key = jax.random.PRNGKey(0)
    kx, kw1, kb1, kw2, kb2 = jax.random.split(key, 5)

    x = jax.random.normal(kx, (batch, input_size), dtype=jnp.float32)

    # Deterministic parameter init (PyTorch-Linear-style uniform bounds).
    bound1 = 1.0 / (input_size ** 0.5)
    w1 = jax.random.uniform(kw1, (hidden_size, input_size), jnp.float32, -bound1, bound1)
    b1 = jax.random.uniform(kb1, (hidden_size,), jnp.float32, -bound1, bound1)
    bound2 = 1.0 / (hidden_size ** 0.5)
    w2 = jax.random.uniform(kw2, (1, hidden_size), jnp.float32, -bound2, bound2)
    b2 = jax.random.uniform(kb2, (1,), jnp.float32, -bound2, bound2)

    # Pure-JAX reference.
    ref = jax.nn.sigmoid(jnp.maximum(x @ w1.T + b1, 0.0) @ w2.T + b2)

    # 1) f32 streaming, multi-tile grid — exact check.
    fwd = jax.jit(functools.partial(neuronet1_forward, block_batch=128))
    out = jax.block_until_ready(fwd(x, w1, b1, w2, b2))
    assert out.shape == (batch, 1)
    assert jnp.allclose(out, ref, atol=1e-5, rtol=1e-5)

    # 2) Default large tile (single grid step at this tiny batch) — exact check.
    out2 = jax.block_until_ready(
        jax.jit(neuronet1_forward)(x, w1, b1, w2, b2))
    assert jnp.allclose(out2, ref, atol=1e-5, rtol=1e-5)

    # 3) bf16 streaming of x / w1 (halved HBM bytes) — relaxed tolerance.
    fwd_bf16 = jax.jit(functools.partial(
        neuronet1_forward, block_batch=128, stream_dtype=jnp.bfloat16))
    out3 = jax.block_until_ready(fwd_bf16(x, w1, b1, w2, b2))
    assert jnp.allclose(out3, ref, atol=3e-2, rtol=3e-2)

    print("KERNEL_OK")
</pallas_src>

<mosaic_0001>
module attributes {stable_mosaic.version = 11 : i64} {
  func.func @neuronet1_kernel(%arg0: i32, %arg1: memref<128x32xf32, #tpu.memory_space<vmem>>, %arg2: memref<32x32xf32, #tpu.memory_space<vmem>>, %arg3: memref<1x32xf32, #tpu.memory_space<vmem>>, %arg4: memref<1x32xf32, #tpu.memory_space<vmem>>, %arg5: memref<1xf32, #tpu.memory_space<smem>>, %arg6: memref<128x1xf32, #tpu.memory_space<vmem>>) attributes {dimension_semantics = [#tpu.dimension_semantics<parallel>], iteration_bounds = array<i64: 3>, scalar_prefetch = 0 : i64, scratch_operands = 0 : i64, tpu.core_type = #tpu.core_type<tc>, window_params = [{transform_indices = @transform_0, window_bounds = array<i64: 128, 32>}, {pipeline_mode = #tpu.pipeline_mode<synchronous>, transform_indices = @transform_1, window_bounds = array<i64: 32, 32>}, {pipeline_mode = #tpu.pipeline_mode<synchronous>, transform_indices = @transform_2, window_bounds = array<i64: 1, 32>}, {pipeline_mode = #tpu.pipeline_mode<synchronous>, transform_indices = @transform_3, window_bounds = array<i64: 1, 32>}, {transform_indices = @transform_4, window_bounds = array<i64: 1>}, {transform_indices = @transform_5, window_bounds = array<i64: 128, 1>}]} {
    %c0 = arith.constant 0 : index
    %c0_0 = arith.constant 0 : index
    %0 = vector.load %arg1[%c0, %c0_0] : memref<128x32xf32, #tpu.memory_space<vmem>>, vector<128x32xf32>
    %c0_1 = arith.constant 0 : index
    %c0_2 = arith.constant 0 : index
    %1 = vector.load %arg2[%c0_1, %c0_2] : memref<32x32xf32, #tpu.memory_space<vmem>>, vector<32x32xf32>
    %cst = arith.constant dense<0.000000e+00> : vector<128x32xf32>
    %2 = tpu.matmul %0, %1, %cst {dimension_numbers = #tpu.dot_dimension_numbers<[1], [0], [0], [1], [0, 0, 1, 1], [], []>} : vector<128x32xf32>, vector<32x32xf32>, vector<128x32xf32> -> vector<128x32xf32>
    %c0_3 = arith.constant 0 : index
    %c0_4 = arith.constant 0 : index
    %3 = vector.load %arg3[%c0_3, %c0_4] : memref<1x32xf32, #tpu.memory_space<vmem>>, vector<1x32xf32>
    %4 = vector.broadcast %3 : vector<1x32xf32> to vector<128x32xf32>
    %5 = arith.addf %2, %4 : vector<128x32xf32>
    %cst_5 = arith.constant 0.000000e+00 : f32
    %6 = vector.broadcast %cst_5 : f32 to vector<128x32xf32>
    %7 = arith.maximumf %5, %6 : vector<128x32xf32>
    %c0_6 = arith.constant 0 : index
    %c0_7 = arith.constant 0 : index
    %8 = vector.load %arg4[%c0_6, %c0_7] : memref<1x32xf32, #tpu.memory_space<vmem>>, vector<1x32xf32>
    %9 = vector.broadcast %8 : vector<1x32xf32> to vector<128x32xf32>
    %10 = arith.mulf %7, %9 : vector<128x32xf32>
    %cst_8 = arith.constant dense<0.000000e+00> : vector<128xf32>
    %11 = vector.multi_reduction <add>, %10, %cst_8 [1] : vector<128x32xf32> to vector<128xf32>
    %12 = vector.shape_cast %11 : vector<128xf32> to vector<128x1xf32>
    %c0_9 = arith.constant 0 : index
    %13 = memref.load %arg5[%c0_9] : memref<1xf32, #tpu.memory_space<smem>>
    %14 = vector.broadcast %13 : f32 to vector<128x1xf32>
    %15 = arith.addf %12, %14 : vector<128x1xf32>
    %16 = math.absf %15 : vector<128x1xf32>
    %cst_10 = arith.constant 0.000000e+00 : f32
    %17 = vector.broadcast %cst_10 : f32 to vector<128x1xf32>
    %18 = arith.subf %17, %16 : vector<128x1xf32>
    %19 = math.exp %18 : vector<128x1xf32>
    %cst_11 = arith.constant 1.000000e+00 : f32
    %20 = vector.broadcast %cst_11 : f32 to vector<128x1xf32>
    %21 = arith.addf %20, %19 : vector<128x1xf32>
    %cst_12 = arith.constant 1.000000e+00 : f32
    %22 = vector.broadcast %cst_12 : f32 to vector<128x1xf32>
    %23 = arith.divf %22, %21 : vector<128x1xf32>
    %cst_13 = arith.constant 0.000000e+00 : f32
    %24 = vector.broadcast %cst_13 : f32 to vector<128x1xf32>
    %25 = arith.cmpf oge, %15, %24 : vector<128x1xf32>
    %26 = arith.mulf %19, %23 : vector<128x1xf32>
    %27 = arith.select %25, %23, %26 : vector<128x1xi1>, vector<128x1xf32>
    %c0_14 = arith.constant 0 : index
    %c0_15 = arith.constant 0 : index
    %28 = vector.load %arg6[%c0_14, %c0_15] : memref<128x1xf32, #tpu.memory_space<vmem>>, vector<128x1xf32>
    tpu.vector_store %arg6[%c0_14, %c0_15], %27 {strides = array<i32>} : memref<128x1xf32, #tpu.memory_space<vmem>>, vector<128x1xf32>,
    return
  }
  func.func @transform_0(%arg0: i32) -> (i32, i32) {
    %c0_i32 = arith.constant 0 : i32
    %c0_i32_0 = arith.constant 0 : i32
    return %arg0, %c0_i32 : i32, i32
  }
  func.func @transform_1(%arg0: i32) -> (i32, i32) {
    %c0_i32 = arith.constant 0 : i32
    %c0_i32_0 = arith.constant 0 : i32
    %c0_i32_1 = arith.constant 0 : i32
    return %c0_i32, %c0_i32_0 : i32, i32
  }
  func.func @transform_2(%arg0: i32) -> (i32, i32) {
    %c0_i32 = arith.constant 0 : i32
    %c0_i32_0 = arith.constant 0 : i32
    %c0_i32_1 = arith.constant 0 : i32
    return %c0_i32, %c0_i32_0 : i32, i32
  }
  func.func @transform_3(%arg0: i32) -> (i32, i32) {
    %c0_i32 = arith.constant 0 : i32
    %c0_i32_0 = arith.constant 0 : i32
    %c0_i32_1 = arith.constant 0 : i32
    return %c0_i32, %c0_i32_0 : i32, i32
  }
  func.func @transform_4(%arg0: i32) -> i32 {
    %c0_i32 = arith.constant 0 : i32
    %c0_i32_0 = arith.constant 0 : i32
    return %c0_i32 : i32
  }
  func.func @transform_5(%arg0: i32) -> (i32, i32) {
    %c0_i32 = arith.constant 0 : i32
    %c0_i32_0 = arith.constant 0 : i32
    return %arg0, %c0_i32 : i32, i32
  }
}

</mosaic_0001>

<llo_original>
// kernel: neuronet1_forward.1
$region0: #{neuronet1_forward.1}
  #allocation0 [shape = 'u32[]', space=smem, size = 0x4, offset = 0x4, fixed_abs, tag = 'smem constant byte address 0x4 - core index']
  #allocation1 [shape = 'u32[72,128]{1,0:T(1,128)}', space=vmem, size = 0x9000, scoped, tag = 'internal scratch']
  #allocation2 [shape = 'f32[1]{0:T(128)S(6)}', space=smem, size = 0x200, scoped, tag = 'scoped memory for neuronet1_forward.1']
  %s0 = inlined_call_operand.vmem [shape: f32[384,32], index: 0, kind: input, shape index: {}]
  %s1 = inlined_call_operand.vmem [shape: f32[32,32], index: 1, kind: input, shape index: {}]
  %s2 = inlined_call_operand.vmem [shape: f32[1,32], index: 2, kind: input, shape index: {}]
  %s3 = inlined_call_operand.vmem [shape: f32[1,32], index: 3, kind: input, shape index: {}]
  %s4 = inlined_call_operand.<no memory space> [shape: f32[1], index: 4, kind: input, shape index: {}]
  %s5 = inlined_call_operand.vmem [shape: f32[384,1], index: 5, kind: output, shape index: {}]
  %s6 = sld [smem:[#allocation0]]
  $region53: #{neuronet1_forward.1} parent=0
    _
  %s8 = ssub.s32 1, %s6
  %s9 = scalar_select 0, %s8, %s6
  %10 = sst [smem:[#allocation2]] %s4
  loop: start=0, step=1, limit=5
  $region2: #{neuronet1_forward.1} parent=0 // loop_pre_header
    _
  $region3: #{neuronet1_forward.1} parent=0 // loop_header
    %s12 = sphi 0, %s16
    %p13 = scmp.ge.s32.totalorder %s12, 5
    %s22 = sphi 0, %s24
    %s25 = sphi 0, %s22
    %s26 = sphi 0, %s25
    %s42 = sphi 0, %s26
    %s46 = sphi 0, %s46
    %s48 = sphi 0, %s46
    %s49 = sphi 0, %s48
    %s63 = sphi 0, %s49
    %s67 = sphi 0, %s67
    %s69 = sphi 0, %s67
    %s70 = sphi 0, %s69
    %s84 = sphi 0, %s70
    %s88 = sphi 0, %s88
    %s90 = sphi 0, %s88
    %s91 = sphi 0, %s90
    %s105 = sphi 0, %s91
    %s109 = sphi 0, %s109
    %s111 = sphi 0, %s109
    %s112 = sphi 0, %s111
    %s126 = sphi 0, %s112
    %s132 = sphi 0, %s134
    %s135 = sphi 0, %s132
    %s136 = sphi 0, %s135
    %s152 = sphi 0, %s136
  $region4: #{neuronet1_forward.1} parent=0 // loop_header_branch
    %15 = sbr.rel (%p13) target = $region8
  $region5: #{neuronet1_forward.1} parent=0 // loop_body
    %s17 = ssub.s32 %s12, 1
    %s18 = ssub.s32 %s12, 2
    %s19 = sadd.s32 %s12, 1
    %s20 = ssub.s32 %s12, %s19
    %p21 = scmp.eq.s32.totalorder %s20, 0
    %s23 = sadd.s32 %s22, 1
    %s24 = scalar_select %p21, %s22, %s23
    %p27 = pneg %p21
    %p28 = scmp.eq.s32.totalorder %s12, 2
    %p29 = por %p27, %p28
    %p30 = scmp.ne.s32.totalorder %s22, %s25
    %p31 = scmp.eq.s32.totalorder %s12, 0
    %p32 = por %p30, %p31
    %p33 = scmp.ne.s32.totalorder %s22, %s25
    %p34 = scmp.eq.s32.totalorder %s17, 2
    %p35 = por %p33, %p34
    %p36 = scmp.ne.s32.totalorder %s25, %s26
    %p37 = scmp.eq.s32.totalorder %s17, 0
    %p38 = por %p36, %p37
    %p39 = scmp.ne.s32.totalorder %s25, %s26
    %p40 = scmp.eq.s32.totalorder %s18, 2
    %p41 = por %p39, %p40
    %p43 = scmp.ne.s32.totalorder %s26, %s42
    %p44 = scmp.eq.s32.totalorder %s18, 0
    %p45 = por %p43, %p44
    %s47 = sadd.s32 %s46, 1
    %p50 = scmp.eq.s32.totalorder %s12, 2
    %p51 = scmp.ne.s32.totalorder %s46, %s48
    %p52 = scmp.eq.s32.totalorder %s12, 0
    %p53 = por %p51, %p52
    %p54 = scmp.ne.s32.totalorder %s46, %s48
    %p55 = scmp.eq.s32.totalorder %s17, 2
    %p56 = por %p54, %p55
    %p57 = scmp.ne.s32.totalorder %s48, %s49
    %p58 = scmp.eq.s32.totalorder %s17, 0
    %p59 = por %p57, %p58
    %p60 = scmp.ne.s32.totalorder %s48, %s49
    %p61 = scmp.eq.s32.totalorder %s18, 2
    %p62 = por %p60, %p61
    %p64 = scmp.ne.s32.totalorder %s49, %s63
    %p65 = scmp.eq.s32.totalorder %s18, 0
    %p66 = por %p64, %p65
    %s68 = sadd.s32 %s67, 1
    %p71 = scmp.eq.s32.totalorder %s12, 2
    %p72 = scmp.ne.s32.totalorder %s67, %s69
    %p73 = scmp.eq.s32.totalorder %s12, 0
    %p74 = por %p72, %p73
    %p75 = scmp.ne.s32.totalorder %s67, %s69
    %p76 = scmp.eq.s32.totalorder %s17, 2
    %p77 = por %p75, %p76
    %p78 = scmp.ne.s32.totalorder %s69, %s70
    %p79 = scmp.eq.s32.totalorder %s17, 0
    %p80 = por %p78, %p79
    %p81 = scmp.ne.s32.totalorder %s69, %s70
    %p82 = scmp.eq.s32.totalorder %s18, 2
    %p83 = por %p81, %p82
    %p85 = scmp.ne.s32.totalorder %s70, %s84
    %p86 = scmp.eq.s32.totalorder %s18, 0
    %p87 = por %p85, %p86
    %s89 = sadd.s32 %s88, 1
    %p92 = scmp.eq.s32.totalorder %s12, 2
    %p93 = scmp.ne.s32.totalorder %s88, %s90
    %p94 = scmp.eq.s32.totalorder %s12, 0
    %p95 = por %p93, %p94
    %p96 = scmp.ne.s32.totalorder %s88, %s90
    %p97 = scmp.eq.s32.totalorder %s17, 2
    %p98 = por %p96, %p97
    %p99 = scmp.ne.s32.totalorder %s90, %s91
    %p100 = scmp.eq.s32.totalorder %s17, 0
    %p101 = por %p99, %p100
    %p102 = scmp.ne.s32.totalorder %s90, %s91
    %p103 = scmp.eq.s32.totalorder %s18, 2
    %p104 = por %p102, %p103
    %p106 = scmp.ne.s32.totalorder %s91, %s105
    %p107 = scmp.eq.s32.totalorder %s18, 0
    %p108 = por %p106, %p107
    %s110 = sadd.s32 %s109, 1
    %p113 = scmp.eq.s32.totalorder %s12, 2
    %p114 = scmp.ne.s32.totalorder %s109, %s111
    %p115 = scmp.eq.s32.totalorder %s12, 0
    %p116 = por %p114, %p115
    %p117 = scmp.ne.s32.totalorder %s109, %s111
    %p118 = scmp.eq.s32.totalorder %s17, 2
    %p119 = por %p117, %p118
    %p120 = scmp.ne.s32.totalorder %s111, %s112
    %p121 = scmp.eq.s32.totalorder %s17, 0
    %p122 = por %p120, %p121
    %p123 = scmp.ne.s32.totalorder %s111, %s112
    %p124 = scmp.eq.s32.totalorder %s18, 2
    %p125 = por %p123, %p124
    %p127 = scmp.ne.s32.totalorder %s112, %s126
    %p128 = scmp.eq.s32.totalorder %s18, 0
    %p129 = por %p127, %p128
    %s130 = ssub.s32 %s12, %s19
    %p131 = scmp.eq.s32.totalorder %s130, 0
    %s133 = sadd.s32 %s132, 1
    %s134 = scalar_select %p131, %s132, %s133
    %p137 = pneg %p131
    %p138 = scmp.eq.s32.totalorder %s12, 2
    %p139 = por %p137, %p138
    %p140 = scmp.ne.s32.totalorder %s132, %s135
    %p141 = scmp.eq.s32.totalorder %s12, 0
    %p142 = por %p140, %p141
    %p143 = scmp.ne.s32.totalorder %s132, %s135
    %p144 = scmp.eq.s32.totalorder %s17, 2
    %p145 = por %p143, %p144
    %p146 = scmp.ne.s32.totalorder %s135, %s136
    %p147 = scmp.eq.s32.totalorder %s17, 0
    %p148 = por %p146, %p147
    %p149 = scmp.ne.s32.totalorder %s135, %s136
    %p150 = scmp.eq.s32.totalorder %s18, 2
    %p151 = por %p149, %p150
    %p153 = scmp.ne.s32.totalorder %s136, %s152
    %p154 = scmp.eq.s32.totalorder %s18, 0
    %p155 = por %p153, %p154
    %p156 = scmp.le.s32.totalorder 1, %s12
    %p157 = scmp.lt.s32.totalorder %s12, 4
    %p158 = pnand %p156, %p157
    %p159 = pneg %p158
    // Predicated region
    $region9: #{neuronet1_forward.1} parent=5 // pred_check
      _
    $region10: #{neuronet1_forward.1} parent=5 // pred_check_branch
      %161 = sbr.rel (%p158) target = $region12
    $region11: #{neuronet1_forward.1} parent=5 // pred_region
      %s162 = ssub.s32 %s12, 1
      // Predicated region
      $region13: #{neuronet1_forward.1} parent=11 // pred_check
        %p163 = pneg %p59
      $region14: #{neuronet1_forward.1} parent=11 // pred_check_branch
        %165 = sbr.rel (%p163) target = $region16
      $region15: #{neuronet1_forward.1} parent=11 // pred_region
        _
      $region16: #{neuronet1_forward.1} parent=11 // pred_fallthru
        _
      // Predicated region
      $region17: #{neuronet1_forward.1} parent=11 // pred_check
        %p166 = pneg %p80
      $region18: #{neuronet1_forward.1} parent=11 // pred_check_branch
        %168 = sbr.rel (%p166) target = $region20
      $region19: #{neuronet1_forward.1} parent=11 // pred_region
        _
      $region20: #{neuronet1_forward.1} parent=11 // pred_fallthru
        _
      // Predicated region
      $region21: #{neuronet1_forward.1} parent=11 // pred_check
        %p169 = pneg %p101
      $region22: #{neuronet1_forward.1} parent=11 // pred_check_branch
        %171 = sbr.rel (%p169) target = $region24
      $region23: #{neuronet1_forward.1} parent=11 // pred_region
        _
      $region24: #{neuronet1_forward.1} parent=11 // pred_fallthru
        _
      // Predicated region
      $region25: #{neuronet1_forward.1} parent=11 // pred_check
        %p172 = pneg %p122
      $region26: #{neuronet1_forward.1} parent=11 // pred_check_branch
        %174 = sbr.rel (%p172) target = $region28
      $region27: #{neuronet1_forward.1} parent=11 // pred_region
        _
      $region28: #{neuronet1_forward.1} parent=11 // pred_fallthru
        _
    $region12: #{neuronet1_forward.1} parent=5 // pred_fallthru
      _
    %p175 = scmp.lt.s32.totalorder %s12, 3
    // Predicated region
    $region29: #{neuronet1_forward.1} parent=5 // pred_check
      %p176 = pneg %p175
    $region30: #{neuronet1_forward.1} parent=5 // pred_check_branch
      %178 = sbr.rel (%p176) target = $region32
    $region31: #{neuronet1_forward.1} parent=5 // pred_region
      // Predicated region
      $region33: #{neuronet1_forward.1} parent=31 // pred_check
        %p179 = pneg %p32
      $region34: #{neuronet1_forward.1} parent=31 // pred_check_branch
        %181 = sbr.rel (%p179) target = $region36
      $region35: #{neuronet1_forward.1} parent=31 // pred_region
        %s182 = smul.u32 16, %s12
        %p183 = scmp.lt.s32.totalorder %s182, 47
        %s184 = scalar_select %p183, %s182, 47
        %s185 = smul.addr %s184, 8
        %s186 = scalar_lea.vmem %s0, %s185
        %s187 = smul.u32 16, %s12
      $region36: #{neuronet1_forward.1} parent=31 // pred_fallthru
        _
    $region32: #{neuronet1_forward.1} parent=5 // pred_fallthru
      _
    %p188 = scmp.le.s32.totalorder 1, %s12
    %p189 = scmp.lt.s32.totalorder %s12, 4
    %p190 = pnand %p188, %p189
    %p191 = pneg %p190
    // Predicated region
    $region37: #{neuronet1_forward.1} parent=5 // pred_check
      _
    $region38: #{neuronet1_forward.1} parent=5 // pred_check_branch
      %193 = sbr.rel (%p190) target = $region40
    $region39: #{neuronet1_forward.1} parent=5 // pred_region
      %s194 = ssub.s32 %s12, 1
      %s195 = smul.u32 16, %s17
      %p196 = scmp.lt.s32.totalorder %s195, 47
      %s197 = scalar_select %p196, %s195, 47
      %s198 = smul.addr %s197, 8
      %s199 = scalar_lea.vmem %s0, %s198
      %p200 = pneg %p38
      %p201 = pneg %p35
      %p202 = pneg %p59
      %p203 = pneg %p56
      %p204 = pneg %p80
      %p205 = pneg %p77
      %p206 = pneg %p101
      %p207 = pneg %p98
      %p208 = pneg %p122
      %p209 = pneg %p119
      %p210 = pneg %p148
      %p211 = pneg %p145
      %s212 = smul.u32 16, %s17
      %p213 = scmp.lt.s32.totalorder %s212, 47
      %s214 = scalar_select %p213, %s212, 47
      %s215 = smul.addr %s214, 8
      %s216 = scalar_lea.vmem %s5, %s215
      %s217 = smul.u32 16, %s17
      %p218 = scmp.lt.s32.totalorder %s217, 47
      %s219 = scalar_select %p218, %s217, 47
      %s220 = smul.addr %s219, 8
      %s221 = scalar_lea.vmem %s0, %s220
      %s222 = smul.u32 16, %s17
      %s223 = smul.u32 16, %s17
      %p224 = scmp.lt.s32.totalorder %s223, 47
      %s225 = scalar_select %p224, %s223, 47
      %s226 = smul.addr %s225, 8
      %s227 = scalar_lea.vmem %s5, %s226
      %s228 = smul.u32 16, %s17
      %v229 = vld [vmem:[%s221] sm:$0xff]
      %v230 = vld [vmem:[%s221 + $0x8] sm:$0xff]
      %v231 = vld [vmem:[%s221 + $0x10] sm:$0xff]
      %v232 = vld [vmem:[%s221 + $0x18] sm:$0xff]
      %v233 = vld [vmem:[%s221 + $0x20] sm:$0xff]
      %v234 = vld [vmem:[%s221 + $0x28] sm:$0xff]
      %v235 = vld [vmem:[%s221 + $0x30] sm:$0xff]
      %v236 = vld [vmem:[%s221 + $0x38] sm:$0xff]
      %v237 = vld [vmem:[%s221 + $0x40] sm:$0xff]
      %v238 = vld [vmem:[%s221 + $0x48] sm:$0xff]
      %v239 = vld [vmem:[%s221 + $0x50] sm:$0xff]
      %v240 = vld [vmem:[%s221 + $0x58] sm:$0xff]
      %v241 = vld [vmem:[%s221 + $0x60] sm:$0xff]
      %v242 = vld [vmem:[%s221 + $0x68] sm:$0xff]
      %v243 = vld [vmem:[%s221 + $0x70] sm:$0xff]
      %v244 = vld [vmem:[%s221 + $0x78] sm:$0xff]
      %v245 = vld [vmem:[%s1] sm:$0xff]
      %v246 = vld [vmem:[%s1 + $0x8] sm:$0xff]
      %v247 = vld [vmem:[%s1 + $0x10] sm:$0xff]
      %v248 = vld [vmem:[%s1 + $0x18] sm:$0xff]
      %v249 = vld [vmem:[%s2] sm:$0x1]
      %v251 = vperm.slane %v249, 0
      %vm253 = vcmask 261120
      %v255 = vsel %vm253, %v229, 0
      %v258 = vsel %vm253, %v230, 0
      %v261 = vsel %vm253, %v231, 0
      %v264 = vsel %vm253, %v232, 0
      %v267 = vsel %vm253, %v233, 0
      %v270 = vsel %vm253, %v234, 0
      %v273 = vsel %vm253, %v235, 0
      %v276 = vsel %vm253, %v236, 0
      %v279 = vsel %vm253, %v237, 0
      %v282 = vsel %vm253, %v238, 0
      %v285 = vsel %vm253, %v239, 0
      %v288 = vsel %vm253, %v240, 0
      %v291 = vsel %vm253, %v241, 0
      %v294 = vsel %vm253, %v242, 0
      %v297 = vsel %vm253, %v243, 0
      %v300 = vsel %vm253, %v244, 0
      %302 = vmatpush.msra.mxu0 0.0
      %303 = vmatpush.msra.mxu0 0.0
      %304 = vmatpush.msra.mxu0 0.0
      %305 = vmatpush.msra.mxu0 0.0
      %306 = vmatpush.msra.mxu0 0.0
      %307 = vmatpush.msra.mxu0 0.0
      %308 = vmatpush.msra.mxu0 0.0
      %309 = vmatpush.msra.mxu0 0.0
      %310 = vmatpush.msra.mxu0 0.0
      %311 = vmatpush.msra.mxu0 0.0
      %312 = vmatpush.msra.mxu0 0.0
      %313 = vmatpush.msra.mxu0 0.0
      %314 = vmatpush.msra.mxu0 %v248
      %315 = vmatpush.msra.mxu0 %v247
      %316 = vmatpush.msra.mxu0 %v246
      %317 = vmatpush.msra.mxu0 %v245
      %318 = vmatmul.f32.gmra.mxu0 %v255
      %v319 = vpop.f32.mrf.mxu0
      %v320 = vadd.f32 %v251, %v319
      %321 = vmatmul.f32.gmra.mxu0 %v258
      %v322 = vpop.f32.mrf.mxu0
      %v323 = vadd.f32 %v251, %v322
      %324 = vmatmul.f32.gmra.mxu0 %v261
      %v325 = vpop.f32.mrf.mxu0
      %v326 = vadd.f32 %v251, %v325
      %327 = vmatmul.f32.gmra.mxu0 %v264
      %v328 = vpop.f32.mrf.mxu0
      %v329 = vadd.f32 %v251, %v328
      %330 = vmatmul.f32.gmra.mxu0 %v267
      %v331 = vpop.f32.mrf.mxu0
      %v332 = vadd.f32 %v251, %v331
      %333 = vmatmul.f32.gmra.mxu0 %v270
      %v334 = vpop.f32.mrf.mxu0
      %v335 = vadd.f32 %v251, %v334
      %336 = vmatmul.f32.gmra.mxu0 %v273
      %v337 = vpop.f32.mrf.mxu0
      %v338 = vadd.f32 %v251, %v337
      %339 = vmatmul.f32.gmra.mxu0 %v276
      %v340 = vpop.f32.mrf.mxu0
      %v341 = vadd.f32 %v251, %v340
      %342 = vmatmul.f32.gmra.mxu0 %v279
      %v343 = vpop.f32.mrf.mxu0
      %v344 = vadd.f32 %v251, %v343
      %345 = vmatmul.f32.gmra.mxu0 %v282
      %v346 = vpop.f32.mrf.mxu0
      %v347 = vadd.f32 %v251, %v346
      %348 = vmatmul.f32.gmra.mxu0 %v285
      %v349 = vpop.f32.mrf.mxu0
      %v350 = vadd.f32 %v251, %v349
      %351 = vmatmul.f32.gmra.mxu0 %v288
      %v352 = vpop.f32.mrf.mxu0
      %v353 = vadd.f32 %v251, %v352
      %354 = vmatmul.f32.gmra.mxu0 %v291
      %v355 = vpop.f32.mrf.mxu0
      %v356 = vadd.f32 %v251, %v355
      %357 = vmatmul.f32.gmra.mxu0 %v294
      %v358 = vpop.f32.mrf.mxu0
      %v359 = vadd.f32 %v251, %v358
      %360 = vmatmul.f32.gmra.mxu0 %v297
      %v361 = vpop.f32.mrf.mxu0
      %v362 = vadd.f32 %v251, %v361
      %363 = vmatmul.f32.gmra.mxu0 %v300
      %v364 = vpop.f32.mrf.mxu0
      %v365 = vadd.f32 %v251, %v364
      %366 = vdwg.mxu0
      %v367 = vmax.f32 %v320, 0.0
      %v368 = vmax.f32 %v323, 0.0
      %v369 = vmax.f32 %v326, 0.0
      %v370 = vmax.f32 %v329, 0.0
      %v371 = vmax.f32 %v332, 0.0
      %v372 = vmax.f32 %v335, 0.0
      %v373 = vmax.f32 %v338, 0.0
      %v374 = vmax.f32 %v341, 0.0
      %v375 = vmax.f32 %v344, 0.0
      %v376 = vmax.f32 %v347, 0.0
      %v377 = vmax.f32 %v350, 0.0
      %v378 = vmax.f32 %v353, 0.0
      %v379 = vmax.f32 %v356, 0.0
      %v380 = vmax.f32 %v359, 0.0
      %v381 = vmax.f32 %v362, 0.0
      %v382 = vmax.f32 %v365, 0.0
      %v383 = vld [vmem:[%s3] sm:$0x1]
      %v385 = vperm.slane %v383, 0
      %v387 = vmul.f32 %v367, %v385
      %v388 = vmul.f32 %v368, %v385
      %v389 = vmul.f32 %v369, %v385
      %v390 = vmul.f32 %v370, %v385
      %v391 = vmul.f32 %v371, %v385
      %v392 = vmul.f32 %v372, %v385
      %v393 = vmul.f32 %v373, %v385
      %v394 = vmul.f32 %v374, %v385
      %v395 = vmul.f32 %v375, %v385
      %v396 = vmul.f32 %v376, %v385
      %v397 = vmul.f32 %v377, %v385
      %v398 = vmul.f32 %v378, %v385
      %v399 = vmul.f32 %v379, %v385
      %v400 = vmul.f32 %v380, %v385
      %v401 = vmul.f32 %v381, %v385
      %v402 = vmul.f32 %v382, %v385
      %v403 = vsel %vm253, %v387, 0.0
      %404 = vadd.xlane.f32.xlu0 %v403
      %v405 = vpop.xlane.xlu0 %404
      %v406 = vsel %vm253, %v388, 0.0
      %407 = vadd.xlane.f32.xlu0 %v406
      %v408 = vpop.xlane.xlu0 %407
      %v409 = vsel %vm253, %v389, 0.0
      %410 = vadd.xlane.f32.xlu0 %v409
      %v411 = vpop.xlane.xlu0 %410
      %v412 = vsel %vm253, %v390, 0.0
      %413 = vadd.xlane.f32.xlu0 %v412
      %v414 = vpop.xlane.xlu0 %413
      %v415 = vsel %vm253, %v391, 0.0
      %416 = vadd.xlane.f32.xlu0 %v415
      %v417 = vpop.xlane.xlu0 %416
      %v418 = vsel %vm253, %v392, 0.0
      %419 = vadd.xlane.f32.xlu0 %v418
      %v420 = vpop.xlane.xlu0 %419
      %v421 = vsel %vm253, %v393, 0.0
      %422 = vadd.xlane.f32.xlu0 %v421
      %v423 = vpop.xlane.xlu0 %422
      %v424 = vsel %vm253, %v394, 0.0
      %425 = vadd.xlane.f32.xlu0 %v424
      %v426 = vpop.xlane.xlu0 %425
      %v427 = vsel %vm253, %v395, 0.0
      %428 = vadd.xlane.f32.xlu0 %v427
      %v429 = vpop.xlane.xlu0 %428
      %v430 = vsel %vm253, %v396, 0.0
      %431 = vadd.xlane.f32.xlu0 %v430
      %v432 = vpop.xlane.xlu0 %431
      %v433 = vsel %vm253, %v397, 0.0
      %434 = vadd.xlane.f32.xlu0 %v433
      %v435 = vpop.xlane.xlu0 %434
      %v436 = vsel %vm253, %v398, 0.0
      %437 = vadd.xlane.f32.xlu0 %v436
      %v438 = vpop.xlane.xlu0 %437
      %v439 = vsel %vm253, %v399, 0.0
      %440 = vadd.xlane.f32.xlu0 %v439
      %v441 = vpop.xlane.xlu0 %440
      %v442 = vsel %vm253, %v400, 0.0
      %443 = vadd.xlane.f32.xlu0 %v442
      %v444 = vpop.xlane.xlu0 %443
      %v445 = vsel %vm253, %v401, 0.0
      %446 = vadd.xlane.f32.xlu0 %v445
      %v447 = vpop.xlane.xlu0 %446
      %v448 = vsel %vm253, %v402, 0.0
      %449 = vadd.xlane.f32.xlu0 %v448
      %v450 = vpop.xlane.xlu0 %449
      %s451 = sld [smem:[#allocation2]]
      %v452 = vstv %s451
      %v453 = vadd.f32 %v405, %v452
      %v454 = vadd.f32 %v408, %v452
      %v455 = vadd.f32 %v411, %v452
      %v456 = vadd.f32 %v414, %v452
      %v457 = vadd.f32 %v417, %v452
      %v458 = vadd.f32 %v420, %v452
      %v459 = vadd.f32 %v423, %v452
      %v460 = vadd.f32 %v426, %v452
      %v461 = vadd.f32 %v429, %v452
      %v462 = vadd.f32 %v432, %v452
      %v463 = vadd.f32 %v435, %v452
      %v464 = vadd.f32 %v438, %v452
      %v465 = vadd.f32 %v441, %v452
      %v466 = vadd.f32 %v444, %v452
      %v467 = vadd.f32 %v447, %v452
      %v468 = vadd.f32 %v450, %v452
      %v469 = vand.u32 2147483647, %v453
      %v470 = vand.u32 2147483647, %v454
      %v471 = vand.u32 2147483647, %v455
      %v472 = vand.u32 2147483647, %v456
      %v473 = vand.u32 2147483647, %v457
      %v474 = vand.u32 2147483647, %v458
      %v475 = vand.u32 2147483647, %v459
      %v476 = vand.u32 2147483647, %v460
      %v477 = vand.u32 2147483647, %v461
      %v478 = vand.u32 2147483647, %v462
      %v479 = vand.u32 2147483647, %v463
      %v480 = vand.u32 2147483647, %v464
      %v481 = vand.u32 2147483647, %v465
      %v482 = vand.u32 2147483647, %v466
      %v483 = vand.u32 2147483647, %v467
      %v484 = vand.u32 2147483647, %v468
      %v485 = vsub.f32 0.0, %v469
      %v486 = vsub.f32 0.0, %v470
      %v487 = vsub.f32 0.0, %v471
      %v488 = vsub.f32 0.0, %v472
      %v489 = vsub.f32 0.0, %v473
      %v490 = vsub.f32 0.0, %v474
      %v491 = vsub.f32 0.0, %v475
      %v492 = vsub.f32 0.0, %v476
      %v493 = vsub.f32 0.0, %v477
      %v494 = vsub.f32 0.0, %v478
      %v495 = vsub.f32 0.0, %v479
      %v496 = vsub.f32 0.0, %v480
      %v497 = vsub.f32 0.0, %v481
      %v498 = vsub.f32 0.0, %v482
      %v499 = vsub.f32 0.0, %v483
      %v500 = vsub.f32 0.0, %v484
      %v501 = vmul.f32 %v485, 1.442695
      %v502 = vpow.pop %v501
      %v503 = vmul.f32 %v486, 1.442695
      %v504 = vpow.pop %v503
      %v505 = vmul.f32 %v487, 1.442695
      %v506 = vpow.pop %v505
      %v507 = vmul.f32 %v488, 1.442695
      %v508 = vpow.pop %v507
      %v509 = vmul.f32 %v489, 1.442695
      %v510 = vpow.pop %v509
      %v511 = vmul.f32 %v490, 1.442695
      %v512 = vpow.pop %v511
      %v513 = vmul.f32 %v491, 1.442695
      %v514 = vpow.pop %v513
      %v515 = vmul.f32 %v492, 1.442695
      %v516 = vpow.pop %v515
      %v517 = vmul.f32 %v493, 1.442695
      %v518 = vpow.pop %v517
      %v519 = vmul.f32 %v494, 1.442695
      %v520 = vpow.pop %v519
      %v521 = vmul.f32 %v495, 1.442695
      %v522 = vpow.pop %v521
      %v523 = vmul.f32 %v496, 1.442695
      %v524 = vpow.pop %v523
      %v525 = vmul.f32 %v497, 1.442695
      %v526 = vpow.pop %v525
      %v527 = vmul.f32 %v498, 1.442695
      %v528 = vpow.pop %v527
      %v529 = vmul.f32 %v499, 1.442695
      %v530 = vpow.pop %v529
      %v531 = vmul.f32 %v500, 1.442695
      %v532 = vpow.pop %v531
      %v533 = vadd.f32 %v502, 1.0
      %v534 = vadd.f32 %v504, 1.0
      %v535 = vadd.f32 %v506, 1.0
      %v536 = vadd.f32 %v508, 1.0
      %v537 = vadd.f32 %v510, 1.0
      %v538 = vadd.f32 %v512, 1.0
      %v539 = vadd.f32 %v514, 1.0
      %v540 = vadd.f32 %v516, 1.0
      %v541 = vadd.f32 %v518, 1.0
      %v542 = vadd.f32 %v520, 1.0
      %v543 = vadd.f32 %v522, 1.0
      %v544 = vadd.f32 %v524, 1.0
      %v545 = vadd.f32 %v526, 1.0
      %v546 = vadd.f32 %v528, 1.0
      %v547 = vadd.f32 %v530, 1.0
      %v548 = vadd.f32 %v532, 1.0
      %v549 = vrcp.pop %v533
      %v550 = vmul.f32 %v533, %v549
      %v551 = vsub.f32 1.0, %v550
      %v552 = vmul.f32 %v549, %v551
      %v553 = vadd.f32 %v549, %v552
      %vm554 = vweird.f32 %v533
      %vm555 = vweird.f32 %v549
      %vm556 = vmor %vm554, %vm555
      %v557 = vsel %vm556, %v549, %v553
      %v558 = vand.u32 2147483647, %v533
      %vm559 = vcmp.eq.f32.partialorder %v558, 8.507059e+37
      %v560 = vand.u32 %v533, 2147483648
      %v561 = vor.u32 1.1754944e-38, %v560
      %v562 = vsel %vm559, %v561, %v557
      %v563 = vmul.f32 1.0, %v562
      %v564 = vrcp.pop %v534
      %v565 = vmul.f32 %v534, %v564
      %v566 = vsub.f32 1.0, %v565
      %v567 = vmul.f32 %v564, %v566
      %v568 = vadd.f32 %v564, %v567
      %vm569 = vweird.f32 %v534
      %vm570 = vweird.f32 %v564
      %vm571 = vmor %vm569, %vm570
      %v572 = vsel %vm571, %v564, %v568
      %v573 = vand.u32 2147483647, %v534
      %vm574 = vcmp.eq.f32.partialorder %v573, 8.507059e+37
      %v575 = vand.u32 %v534, 2147483648
      %v576 = vor.u32 1.1754944e-38, %v575
      %v577 = vsel %vm574, %v576, %v572
      %v578 = vmul.f32 1.0, %v577
      %v579 = vrcp.pop %v535
      %v580 = vmul.f32 %v535, %v579
      %v581 = vsub.f32 1.0, %v580
      %v582 = vmul.f32 %v579, %v581
      %v583 = vadd.f32 %v579, %v582
      %vm584 = vweird.f32 %v535
      %vm585 = vweird.f32 %v579
      %vm586 = vmor %vm584, %vm585
      %v587 = vsel %vm586, %v579, %v583
      %v588 = vand.u32 2147483647, %v535
      %vm589 = vcmp.eq.f32.partialorder %v588, 8.507059e+37
      %v590 = vand.u32 %v535, 2147483648
      %v591 = vor.u32 1.1754944e-38, %v590
      %v592 = vsel %vm589, %v591, %v587
      %v593 = vmul.f32 1.0, %v592
      %v594 = vrcp.pop %v536
      %v595 = vmul.f32 %v536, %v594
      %v596 = vsub.f32 1.0, %v595
      %v597 = vmul.f32 %v594, %v596
      %v598 = vadd.f32 %v594, %v597
      %vm599 = vweird.f32 %v536
      %vm600 = vweird.f32 %v594
      %vm601 = vmor %vm599, %vm600
      %v602 = vsel %vm601, %v594, %v598
      %v603 = vand.u32 2147483647, %v536
      %vm604 = vcmp.eq.f32.partialorder %v603, 8.507059e+37
      %v605 = vand.u32 %v536, 2147483648
      %v606 = vor.u32 1.1754944e-38, %v605
      %v607 = vsel %vm604, %v606, %v602
      %v608 = vmul.f32 1.0, %v607
      %v609 = vrcp.pop %v537
      %v610 = vmul.f32 %v537, %v609
      %v611 = vsub.f32 1.0, %v610
      %v612 = vmul.f32 %v609, %v611
      %v613 = vadd.f32 %v609, %v612
      %vm614 = vweird.f32 %v537
      %vm615 = vweird.f32 %v609
      %vm616 = vmor %vm614, %vm615
      %v617 = vsel %vm616, %v609, %v613
      %v618 = vand.u32 2147483647, %v537
      %vm619 = vcmp.eq.f32.partialorder %v618, 8.507059e+37
      %v620 = vand.u32 %v537, 2147483648
      %v621 = vor.u32 1.1754944e-38, %v620
      %v622 = vsel %vm619, %v621, %v617
      %v623 = vmul.f32 1.0, %v622
      %v624 = vrcp.pop %v538
      %v625 = vmul.f32 %v538, %v624
      %v626 = vsub.f32 1.0, %v625
      %v627 = vmul.f32 %v624, %v626
      %v628 = vadd.f32 %v624, %v627
      %vm629 = vweird.f32 %v538
      %vm630 = vweird.f32 %v624
      %vm631 = vmor %vm629, %vm630
      %v632 = vsel %vm631, %v624, %v628
      %v633 = vand.u32 2147483647, %v538
      %vm634 = vcmp.eq.f32.partialorder %v633, 8.507059e+37
      %v635 = vand.u32 %v538, 2147483648
      %v636 = vor.u32 1.1754944e-38, %v635
      %v637 = vsel %vm634, %v636, %v632
      %v638 = vmul.f32 1.0, %v637
      %v639 = vrcp.pop %v539
      %v640 = vmul.f32 %v539, %v639
      %v641 = vsub.f32 1.0, %v640
      %v642 = vmul.f32 %v639, %v641
      %v643 = vadd.f32 %v639, %v642
      %vm644 = vweird.f32 %v539
      %vm645 = vweird.f32 %v639
      %vm646 = vmor %vm644, %vm645
      %v647 = vsel %vm646, %v639, %v643
      %v648 = vand.u32 2147483647, %v539
      %vm649 = vcmp.eq.f32.partialorder %v648, 8.507059e+37
      %v650 = vand.u32 %v539, 2147483648
      %v651 = vor.u32 1.1754944e-38, %v650
      %v652 = vsel %vm649, %v651, %v647
      %v653 = vmul.f32 1.0, %v652
      %v654 = vrcp.pop %v540
      %v655 = vmul.f32 %v540, %v654
      %v656 = vsub.f32 1.0, %v655
      %v657 = vmul.f32 %v654, %v656
      %v658 = vadd.f32 %v654, %v657
      %vm659 = vweird.f32 %v540
      %vm660 = vweird.f32 %v654
      %vm661 = vmor %vm659, %vm660
      %v662 = vsel %vm661, %v654, %v658
      %v663 = vand.u32 2147483647, %v540
      %vm664 = vcmp.eq.f32.partialorder %v663, 8.507059e+37
      %v665 = vand.u32 %v540, 2147483648
      %v666 = vor.u32 1.1754944e-38, %v665
      %v667 = vsel %vm664, %v666, %v662
      %v668 = vmul.f32 1.0, %v667
      %v669 = vrcp.pop %v541
      %v670 = vmul.f32 %v541, %v669
      %v671 = vsub.f32 1.0, %v670
      %v672 = vmul.f32 %v669, %v671
      %v673 = vadd.f32 %v669, %v672
      %vm674 = vweird.f32 %v541
      %vm675 = vweird.f32 %v669
      %vm676 = vmor %vm674, %vm675
      %v677 = vsel %vm676, %v669, %v673
      %v678 = vand.u32 2147483647, %v541
      %vm679 = vcmp.eq.f32.partialorder %v678, 8.507059e+37
      %v680 = vand.u32 %v541, 2147483648
      %v681 = vor.u32 1.1754944e-38, %v680
      %v682 = vsel %vm679, %v681, %v677
      %v683 = vmul.f32 1.0, %v682
      %v684 = vrcp.pop %v542
      %v685 = vmul.f32 %v542, %v684
      %v686 = vsub.f32 1.0, %v685
      %v687 = vmul.f32 %v684, %v686
      %v688 = vadd.f32 %v684, %v687
      %vm689 = vweird.f32 %v542
      %vm690 = vweird.f32 %v684
      %vm691 = vmor %vm689, %vm690
      %v692 = vsel %vm691, %v684, %v688
      %v693 = vand.u32 2147483647, %v542
      %vm694 = vcmp.eq.f32.partialorder %v693, 8.507059e+37
      %v695 = vand.u32 %v542, 2147483648
      %v696 = vor.u32 1.1754944e-38, %v695
      %v697 = vsel %vm694, %v696, %v692
      %v698 = vmul.f32 1.0, %v697
      %v699 = vrcp.pop %v543
      %v700 = vmul.f32 %v543, %v699
      %v701 = vsub.f32 1.0, %v700
      %v702 = vmul.f32 %v699, %v701
      %v703 = vadd.f32 %v699, %v702
      %vm704 = vweird.f32 %v543
      %vm705 = vweird.f32 %v699
      %vm706 = vmor %vm704, %vm705
      %v707 = vsel %vm706, %v699, %v703
      %v708 = vand.u32 2147483647, %v543
      %vm709 = vcmp.eq.f32.partialorder %v708, 8.507059e+37
      %v710 = vand.u32 %v543, 2147483648
      %v711 = vor.u32 1.1754944e-38, %v710
      %v712 = vsel %vm709, %v711, %v707
      %v713 = vmul.f32 1.0, %v712
      %v714 = vrcp.pop %v544
      %v715 = vmul.f32 %v544, %v714
      %v716 = vsub.f32 1.0, %v715
      %v717 = vmul.f32 %v714, %v716
      %v718 = vadd.f32 %v714, %v717
      %vm719 = vweird.f32 %v544
      %vm720 = vweird.f32 %v714
      %vm721 = vmor %vm719, %vm720
      %v722 = vsel %vm721, %v714, %v718
      %v723 = vand.u32 2147483647, %v544
      %vm724 = vcmp.eq.f32.partialorder %v723, 8.507059e+37
      %v725 = vand.u32 %v544, 2147483648
      %v726 = vor.u32 1.1754944e-38, %v725
      %v727 = vsel %vm724, %v726, %v722
      %v728 = vmul.f32 1.0, %v727
      %v729 = vrcp.pop %v545
      %v730 = vmul.f32 %v545, %v729
      %v731 = vsub.f32 1.0, %v730
      %v732 = vmul.f32 %v729, %v731
      %v733 = vadd.f32 %v729, %v732
      %vm734 = vweird.f32 %v545
      %vm735 = vweird.f32 %v729
      %vm736 = vmor %vm734, %vm735
      %v737 = vsel %vm736, %v729, %v733
      %v738 = vand.u32 2147483647, %v545
      %vm739 = vcmp.eq.f32.partialorder %v738, 8.507059e+37
      %v740 = vand.u32 %v545, 2147483648
      %v741 = vor.u32 1.1754944e-38, %v740
      %v742 = vsel %vm739, %v741, %v737
      %v743 = vmul.f32 1.0, %v742
      %v744 = vrcp.pop %v546
      %v745 = vmul.f32 %v546, %v744
      %v746 = vsub.f32 1.0, %v745
      %v747 = vmul.f32 %v744, %v746
      %v748 = vadd.f32 %v744, %v747
      %vm749 = vweird.f32 %v546
      %vm750 = vweird.f32 %v744
      %vm751 = vmor %vm749, %vm750
      %v752 = vsel %vm751, %v744, %v748
      %v753 = vand.u32 2147483647, %v546
      %vm754 = vcmp.eq.f32.partialorder %v753, 8.507059e+37
      %v755 = vand.u32 %v546, 2147483648
      %v756 = vor.u32 1.1754944e-38, %v755
      %v757 = vsel %vm754, %v756, %v752
      %v758 = vmul.f32 1.0, %v757
      %v759 = vrcp.pop %v547
      %v760 = vmul.f32 %v547, %v759
      %v761 = vsub.f32 1.0, %v760
      %v762 = vmul.f32 %v759, %v761
      %v763 = vadd.f32 %v759, %v762
      %vm764 = vweird.f32 %v547
      %vm765 = vweird.f32 %v759
      %vm766 = vmor %vm764, %vm765
      %v767 = vsel %vm766, %v759, %v763
      %v768 = vand.u32 2147483647, %v547
      %vm769 = vcmp.eq.f32.partialorder %v768, 8.507059e+37
      %v770 = vand.u32 %v547, 2147483648
      %v771 = vor.u32 1.1754944e-38, %v770
      %v772 = vsel %vm769, %v771, %v767
      %v773 = vmul.f32 1.0, %v772
      %v774 = vrcp.pop %v548
      %v775 = vmul.f32 %v548, %v774
      %v776 = vsub.f32 1.0, %v775
      %v777 = vmul.f32 %v774, %v776
      %v778 = vadd.f32 %v774, %v777
      %vm779 = vweird.f32 %v548
      %vm780 = vweird.f32 %v774
      %vm781 = vmor %vm779, %vm780
      %v782 = vsel %vm781, %v774, %v778
      %v783 = vand.u32 2147483647, %v548
      %vm784 = vcmp.eq.f32.partialorder %v783, 8.507059e+37
      %v785 = vand.u32 %v548, 2147483648
      %v786 = vor.u32 1.1754944e-38, %v785
      %v787 = vsel %vm784, %v786, %v782
      %v788 = vmul.f32 1.0, %v787
      %vm789 = vcmp.ge.f32.partialorder %v453, 0.0
      %vm790 = vcmp.ge.f32.partialorder %v454, 0.0
      %vm791 = vcmp.ge.f32.partialorder %v455, 0.0
      %vm792 = vcmp.ge.f32.partialorder %v456, 0.0
      %vm793 = vcmp.ge.f32.partialorder %v457, 0.0
      %vm794 = vcmp.ge.f32.partialorder %v458, 0.0
      %vm795 = vcmp.ge.f32.partialorder %v459, 0.0
      %vm796 = vcmp.ge.f32.partialorder %v460, 0.0
      %vm797 = vcmp.ge.f32.partialorder %v461, 0.0
      %vm798 = vcmp.ge.f32.partialorder %v462, 0.0
      %vm799 = vcmp.ge.f32.partialorder %v463, 0.0
      %vm800 = vcmp.ge.f32.partialorder %v464, 0.0
      %vm801 = vcmp.ge.f32.partialorder %v465, 0.0
      %vm802 = vcmp.ge.f32.partialorder %v466, 0.0
      %vm803 = vcmp.ge.f32.partialorder %v467, 0.0
      %vm804 = vcmp.ge.f32.partialorder %v468, 0.0
      %v805 = vmul.f32 %v502, %v563
      %v806 = vmul.f32 %v504, %v578
      %v807 = vmul.f32 %v506, %v593
      %v808 = vmul.f32 %v508, %v608
      %v809 = vmul.f32 %v510, %v623
      %v810 = vmul.f32 %v512, %v638
      %v811 = vmul.f32 %v514, %v653
      %v812 = vmul.f32 %v516, %v668
      %v813 = vmul.f32 %v518, %v683
      %v814 = vmul.f32 %v520, %v698
      %v815 = vmul.f32 %v522, %v713
      %v816 = vmul.f32 %v524, %v728
      %v817 = vmul.f32 %v526, %v743
      %v818 = vmul.f32 %v528, %v758
      %v819 = vmul.f32 %v530, %v773
      %v820 = vmul.f32 %v532, %v788
      %v821 = vsel %vm789, %v563, %v805
      %v822 = vsel %vm790, %v578, %v806
      %v823 = vsel %vm791, %v593, %v807
      %v824 = vsel %vm792, %v608, %v808
      %v825 = vsel %vm793, %v623, %v809
      %v826 = vsel %vm794, %v638, %v810
      %v827 = vsel %vm795, %v653, %v811
      %v828 = vsel %vm796, %v668, %v812
      %v829 = vsel %vm797, %v683, %v813
      %v830 = vsel %vm798, %v698, %v814
      %v831 = vsel %vm799, %v713, %v815
      %v832 = vsel %vm800, %v728, %v816
      %v833 = vsel %vm801, %v743, %v817
      %v834 = vsel %vm802, %v758, %v818
      %v835 = vsel %vm803, %v773, %v819
      %v836 = vsel %vm804, %v788, %v820
      %vm837 = vcmask 7168
      %838 = vst.msk [vmem:[%s227] sm:$0xff] %vm837, %v821
      %839 = vst.msk [vmem:[%s227 + $0x8] sm:$0xff] %vm837, %v822
      %840 = vst.msk [vmem:[%s227 + $0x10] sm:$0xff] %vm837, %v823
      %841 = vst.msk [vmem:[%s227 + $0x18] sm:$0xff] %vm837, %v824
      %842 = vst.msk [vmem:[%s227 + $0x20] sm:$0xff] %vm837, %v825
      %843 = vst.msk [vmem:[%s227 + $0x28] sm:$0xff] %vm837, %v826
      %844 = vst.msk [vmem:[%s227 + $0x30] sm:$0xff] %vm837, %v827
      %845 = vst.msk [vmem:[%s227 + $0x38] sm:$0xff] %vm837, %v828
      %846 = vst.msk [vmem:[%s227 + $0x40] sm:$0xff] %vm837, %v829
      %847 = vst.msk [vmem:[%s227 + $0x48] sm:$0xff] %vm837, %v830
      %848 = vst.msk [vmem:[%s227 + $0x50] sm:$0xff] %vm837, %v831
      %849 = vst.msk [vmem:[%s227 + $0x58] sm:$0xff] %vm837, %v832
      %850 = vst.msk [vmem:[%s227 + $0x60] sm:$0xff] %vm837, %v833
      %851 = vst.msk [vmem:[%s227 + $0x68] sm:$0xff] %vm837, %v834
      %852 = vst.msk [vmem:[%s227 + $0x70] sm:$0xff] %vm837, %v835
      %853 = vst.msk [vmem:[%s227 + $0x78] sm:$0xff] %vm837, %v836
      %s854 = smul.u32 16, %s17
      %p855 = scmp.lt.s32.totalorder %s854, 47
      %s856 = scalar_select %p855, %s854, 47
      %s857 = smul.addr %s856, 8
      %s858 = scalar_lea.vmem %s5, %s857
      // Predicated region
      $region41: #{neuronet1_forward.1} parent=39 // pred_check
        %p859 = pneg %p145
      $region42: #{neuronet1_forward.1} parent=39 // pred_check_branch
        %861 = sbr.rel (%p859) target = $region44
      $region43: #{neuronet1_forward.1} parent=39 // pred_region
        %s862 = smul.u32 16, %s17
      $region44: #{neuronet1_forward.1} parent=39 // pred_fallthru
        _
    $region40: #{neuronet1_forward.1} parent=5 // pred_fallthru
      _
    %p863 = scmp.le.s32.totalorder 2, %s12
    // Predicated region
    $region45: #{neuronet1_forward.1} parent=5 // pred_check
      %p864 = pneg %p863
    $region46: #{neuronet1_forward.1} parent=5 // pred_check_branch
      %866 = sbr.rel (%p864) target = $region48
    $region47: #{neuronet1_forward.1} parent=5 // pred_region
      %s867 = ssub.s32 %s12, 2
      // Predicated region
      $region49: #{neuronet1_forward.1} parent=47 // pred_check
        %p868 = pneg %p151
      $region50: #{neuronet1_forward.1} parent=47 // pred_check_branch
        %870 = sbr.rel (%p868) target = $region52
      $region51: #{neuronet1_forward.1} parent=47 // pred_region
        %s871 = smul.u32 16, %s18
        %p872 = scmp.lt.s32.totalorder %s871, 47
        %s873 = scalar_select %p872, %s871, 47
        %s874 = smul.addr %s873, 8
        %s875 = scalar_lea.vmem %s5, %s874
      $region52: #{neuronet1_forward.1} parent=47 // pred_fallthru
        _
    $region48: #{neuronet1_forward.1} parent=5 // pred_fallthru
      _
  $region6: #{neuronet1_forward.1} parent=0 // loop_footer
    %s16 = sadd.s32 1, %s12
  $region7: #{neuronet1_forward.1} parent=0 // loop_footer_branch
    %11 = sbr.rel target = $region3
  $region8: #{neuronet1_forward.1} parent=0 // loop_exit
    _

</llo_original>
